<compile_context>
chip_gen: v6e
topology: v6e:2x2x1
jax: 0.10.0
libtpu: 0.0.40
codegen_flags: <defaults>
</compile_context>

<pallas_src>
import jax
import jax.numpy as jnp
from jax.experimental import pallas as pl
from jax.experimental.pallas import tpu as pltpu


def _patch_unembed_kernel(x_ref, o_ref):
    # x_ref: (1, TL, TC)  ->  o_ref: (1, TC, TL)   (XLU transpose of one tile)
    o_ref[...] = jnp.swapaxes(x_ref[...], 1, 2)


def patch_unembed(x, x_size, embed_dim, *, tl_target=512):
    """Pallas equivalent of PatchUnEmbed.forward.

    x: (B, L, C) with L == x_size[0] * x_size[1] and C == embed_dim.
    Returns (B, C, H, W), identical to `x.transpose(1, 2).view(B, C, H, W)`.
    """
    B, L, C = x.shape
    H, W = x_size
    assert L == H * W and C == embed_dim

    # --- tile selection ------------------------------------------------------
    # TL: rows of the (L, C) slab per step.  512 is the measured sweet spot for
    # mem-bound tiled copies (85%+ of HBM roofline vs ~29% at 128) and is a
    # multiple of 128, keeping the output block's last (lane) dim unmasked.
    # If all of L fits in one tile, take the full dim (always legal).
    TL = L if L <= tl_target else tl_target
    # TC: channel chunk on the input's lane axis.  Full C if it fits in one
    # 128-lane row, else lane-dense 128-wide chunks (ragged tail is masked).
    TC = C if C <= 128 else 128

    n_l = pl.cdiv(L, TL)
    n_c = pl.cdiv(C, TC)

    out_bcl = pl.pallas_call(
        _patch_unembed_kernel,
        out_shape=jax.ShapeDtypeStruct((B, C, L), x.dtype),
        grid_spec=pltpu.PrefetchScalarGridSpec(
            num_scalar_prefetch=0,
            grid=(B, n_c, n_l),
            in_specs=[pl.BlockSpec((1, TL, TC), lambda b, c, l: (b, l, c))],
            out_specs=pl.BlockSpec((1, TC, TL), lambda b, c, l: (b, c, l)),
        ),
        compiler_params=pltpu.CompilerParams(
            # Pure permute: every grid point is independent -> all parallel,
            # so both TensorCores (v7x) get fed even when B is 1-2.
            dimension_semantics=("parallel", "parallel", "parallel"),
            # Explicit budget: tiles are <1 MiB double-buffered, so 32 MiB is
            # ample headroom and valid on v5e (128 MiB phys) and v7x (64 MiB).
            vmem_limit_bytes=32 * 1024 * 1024,
        ),
        # Advisory for XLA's scheduler: zero flops, pure HBM read + write.
        cost_estimate=pl.CostEstimate(
            flops=0,
            transcendentals=0,
            bytes_accessed=2 * B * L * C * x.dtype.itemsize,
        ),
    )(x)

    # .view(B, C, H, W) -- metadata-only reshape, done in plain JAX glue.
    return out_bcl.reshape(B, C, H, W)


def _reference(x, x_size, embed_dim):
    B, L, C = x.shape
    H, W = x_size
    return jnp.transpose(x, (0, 2, 1)).reshape(B, C, H, W)


if __name__ == "__main__":
    key = jax.random.PRNGKey(0)

    cases = [
        # (B, H, W, C, dtype)
        (2, 8, 8, 32, jnp.float32),      # small spec-like shape (single tile)
        (2, 64, 64, 256, jnp.float32),   # L=4096 -> 8 L-tiles, 2 full C-chunks
        (1, 40, 40, 180, jnp.bfloat16),  # MCNet-ish: ragged L and C tiles
    ]

    for i, (B, H, W, C, dtype) in enumerate(cases):
        key, sub = jax.random.split(key)
        L = H * W
        x = jax.random.normal(sub, (B, L, C), dtype=jnp.float32).astype(dtype)

        out = patch_unembed(x, (H, W), embed_dim=C)
        out = jax.block_until_ready(out)
        ref = _reference(x, (H, W), C)

        assert out.shape == (B, C, H, W), (out.shape, (B, C, H, W))
        assert out.dtype == x.dtype
        assert jnp.array_equal(out, ref), f"mismatch vs reference in case {i}"

    print("KERNEL_OK")
</pallas_src>

<mosaic_0001>
module attributes {stable_mosaic.version = 11 : i64} {
  func.func @_patch_unembed_kernel(%arg0: i32, %arg1: i32, %arg2: i32, %arg3: memref<1x64x32xf32, #tpu.memory_space<vmem>>, %arg4: memref<1x32x64xf32, #tpu.memory_space<vmem>>) attributes {dimension_semantics = [#tpu.dimension_semantics<parallel>, #tpu.dimension_semantics<parallel>, #tpu.dimension_semantics<parallel>], iteration_bounds = array<i64: 2, 1, 1>, scalar_prefetch = 0 : i64, scratch_operands = 0 : i64, tpu.core_type = #tpu.core_type<tc>, window_params = [{transform_indices = @transform_0, window_bounds = array<i64: 1, 64, 32>}, {transform_indices = @transform_1, window_bounds = array<i64: 1, 32, 64>}]} {
    %c0 = arith.constant 0 : index
    %c0_0 = arith.constant 0 : index
    %c0_1 = arith.constant 0 : index
    %0 = vector.load %arg3[%c0, %c0_0, %c0_1] : memref<1x64x32xf32, #tpu.memory_space<vmem>>, vector<1x64x32xf32>
    %1 = tpu.transpose %0, [0, 2, 1] : vector<1x64x32xf32> -> vector<1x32x64xf32>
    %c0_2 = arith.constant 0 : index
    %c0_3 = arith.constant 0 : index
    %c0_4 = arith.constant 0 : index
    %2 = vector.load %arg4[%c0_2, %c0_3, %c0_4] : memref<1x32x64xf32, #tpu.memory_space<vmem>>, vector<1x32x64xf32>
    tpu.vector_store %arg4[%c0_2, %c0_3, %c0_4], %1 {strides = array<i32>} : memref<1x32x64xf32, #tpu.memory_space<vmem>>, vector<1x32x64xf32>,
    return
  }
  func.func @transform_0(%arg0: i32, %arg1: i32, %arg2: i32) -> (i32, i32, i32) {
    %c0_i32 = arith.constant 0 : i32
    return %arg0, %arg2, %arg1 : i32, i32, i32
  }
  func.func @transform_1(%arg0: i32, %arg1: i32, %arg2: i32) -> (i32, i32, i32) {
    %c0_i32 = arith.constant 0 : i32
    return %arg0, %arg1, %arg2 : i32, i32, i32
  }
}

</mosaic_0001>

<llo_original>
// kernel: tpu_custom_call.1
$region0: #{tpu_custom_call.1}
  #allocation0 [shape = 'u32[]', space=smem, size = 0x4, offset = 0x4, fixed_abs, tag = 'smem constant byte address 0x4 - core index']
  #allocation1 [shape = 'u32[144,128]{1,0:T(1,128)}', space=vmem, size = 0x12000, scoped, tag = 'internal scratch']
  %s0 = inlined_call_operand.vmem [shape: f32[2,64,32], index: 0, kind: input, shape index: {}]
  %s1 = inlined_call_operand.hbm [shape: f32[2,32,64], index: 1, kind: output, shape index: {}]
  %s2 = sld [smem:[#allocation0]]
  $region37: #{tpu_custom_call.1} parent=0
    _
  %s4 = ssub.s32 1, %s2
  %s5 = scalar_select 0, %s4, %s2
  $region1: #{tpu_custom_call.1} parent=0
    #allocation2 [shape = 'u8[32768]{0}', space=vmem, size = 0x8000, scoped, tag = 'output window, operand 0']
    #allocation3 [shape = 's32[2]{0}', space=sflag, size = 0x8, scoped, tag = 'scoped memory for tpu_custom_call.1']
    %6 = vsyncpa [#allocation3], 0
    %s7 = scalar_lea.sflag [#allocation3], 1
    %8 = vsyncpa %s7, 0
    loop: start=0, step=1, limit=4
    $region2: #{tpu_custom_call.1} parent=1 // loop_pre_header
      _
    $region3: #{tpu_custom_call.1} parent=1 // loop_header
      %s10 = sphi 0, %s14
      %p11 = scmp.ge.s32.totalorder %s10, 4
      %s17 = sphi 0, %s36
      %s18 = sphi 0, %s32
      %s19 = sphi 0, %s28
      %s20 = sphi 0, %s17
      %s21 = sphi 0, %s18
      %s22 = sphi 0, %s19
      %s23 = sphi 0, %s20
      %s24 = sphi 0, %s21
      %s25 = sphi 0, %s22
      %s43 = sphi 0, %s45
      %s46 = sphi 0, %s43
      %s47 = sphi 0, %s46
      %s63 = sphi 0, %s47
      %s73 = sphi 0, %s75
      %s76 = sphi 0, %s73
      %s77 = sphi 0, %s76
      %s93 = sphi 0, %s77
    $region4: #{tpu_custom_call.1} parent=1 // loop_header_branch
      %13 = sbr.rel (%p11) target = $region8
    $region5: #{tpu_custom_call.1} parent=1 // loop_body
      %s15 = ssub.s32 %s10, 1
      %s16 = ssub.s32 %s10, 2
      %s26 = sadd.s32 1, %s19
      %p27 = scmp.ge.s32.totalorder %s26, 1
      %s28 = scalar_select %p27, 0, %s26
      %s29 = sadd.s32 1, %s18
      %s30 = scalar_select %p27, %s29, %s18
      %p31 = scmp.ge.s32.totalorder %s30, 1
      %s32 = scalar_select %p31, 0, %s30
      %s33 = sadd.s32 1, %s17
      %s34 = scalar_select %p31, %s33, %s17
      %p35 = scmp.ge.s32.totalorder %s34, 2
      %s36 = scalar_select %p35, 0, %s34
      %s37 = ssub.s32 %s17, %s36
      %s38 = ssub.s32 %s19, %s28
      %s39 = sor.u32 %s37, %s38
      %s40 = ssub.s32 %s18, %s32
      %s41 = sor.u32 %s39, %s40
      %p42 = scmp.eq.s32.totalorder %s41, 0
      %s44 = sadd.s32 %s43, 1
      %s45 = scalar_select %p42, %s43, %s44
      %p48 = pneg %p42
      %p49 = scmp.eq.s32.totalorder %s10, 1
      %p50 = por %p48, %p49
      %p51 = scmp.ne.s32.totalorder %s43, %s46
      %p52 = scmp.eq.s32.totalorder %s10, 0
      %p53 = por %p51, %p52
      %p54 = scmp.ne.s32.totalorder %s43, %s46
      %p55 = scmp.eq.s32.totalorder %s15, 1
      %p56 = por %p54, %p55
      %p57 = scmp.ne.s32.totalorder %s46, %s47
      %p58 = scmp.eq.s32.totalorder %s15, 0
      %p59 = por %p57, %p58
      %p60 = scmp.ne.s32.totalorder %s46, %s47
      %p61 = scmp.eq.s32.totalorder %s16, 1
      %p62 = por %p60, %p61
      %p64 = scmp.ne.s32.totalorder %s47, %s63
      %p65 = scmp.eq.s32.totalorder %s16, 0
      %p66 = por %p64, %p65
      %s67 = ssub.s32 %s17, %s36
      %s68 = ssub.s32 %s18, %s32
      %s69 = sor.u32 %s67, %s68
      %s70 = ssub.s32 %s19, %s28
      %s71 = sor.u32 %s69, %s70
      %p72 = scmp.eq.s32.totalorder %s71, 0
      %s74 = sadd.s32 %s73, 1
      %s75 = scalar_select %p72, %s73, %s74
      %p78 = pneg %p72
      %p79 = scmp.eq.s32.totalorder %s10, 1
      %p80 = por %p78, %p79
      %p81 = scmp.ne.s32.totalorder %s73, %s76
      %p82 = scmp.eq.s32.totalorder %s10, 0
      %p83 = por %p81, %p82
      %p84 = scmp.ne.s32.totalorder %s73, %s76
      %p85 = scmp.eq.s32.totalorder %s15, 1
      %p86 = por %p84, %p85
      %p87 = scmp.ne.s32.totalorder %s76, %s77
      %p88 = scmp.eq.s32.totalorder %s15, 0
      %p89 = por %p87, %p88
      %p90 = scmp.ne.s32.totalorder %s76, %s77
      %p91 = scmp.eq.s32.totalorder %s16, 1
      %p92 = por %p90, %p91
      %p94 = scmp.ne.s32.totalorder %s77, %s93
      %p95 = scmp.eq.s32.totalorder %s16, 0
      %p96 = por %p94, %p95
      %p97 = scmp.le.s32.totalorder 1, %s10
      %p98 = scmp.lt.s32.totalorder %s10, 3
      %p99 = pnand %p97, %p98
      %p100 = pneg %p99
      // Predicated region
      $region9: #{tpu_custom_call.1} parent=5 // pred_check
        _
      $region10: #{tpu_custom_call.1} parent=5 // pred_check_branch
        %102 = sbr.rel (%p99) target = $region12
      $region11: #{tpu_custom_call.1} parent=5 // pred_region
        %s103 = ssub.s32 %s10, 1
      $region12: #{tpu_custom_call.1} parent=5 // pred_fallthru
        _
      %p104 = scmp.lt.s32.totalorder %s10, 2
      // Predicated region
      $region13: #{tpu_custom_call.1} parent=5 // pred_check
        %p105 = pneg %p104
      $region14: #{tpu_custom_call.1} parent=5 // pred_check_branch
        %107 = sbr.rel (%p105) target = $region16
      $region15: #{tpu_custom_call.1} parent=5 // pred_region
        // Predicated region
        $region17: #{tpu_custom_call.1} parent=15 // pred_check
          %p108 = pneg %p53
        $region18: #{tpu_custom_call.1} parent=15 // pred_check_branch
          %110 = sbr.rel (%p108) target = $region20
        $region19: #{tpu_custom_call.1} parent=15 // pred_region
          %s111 = smul.u32 8, %s19
          %p112 = scmp.lt.s32.totalorder %s17, 1
          %s113 = scalar_select %p112, %s17, 1
          %p114 = scmp.lt.s32.totalorder %s111, 7
          %s115 = scalar_select %p114, %s111, 7
          %p116 = scmp.lt.s32.totalorder %s18, 0
          %s117 = scalar_select %p116, %s18, 0
          %s118 = sadd.s32 %s117, %s115
          %s119 = smul.addr %s113, 8
          %s120 = sadd.s32 %s118, %s119
          %s121 = smul.addr %s120, 8
          %s122 = scalar_lea.vmem %s0, %s121
          %s123 = smul.u32 8, %s19
        $region20: #{tpu_custom_call.1} parent=15 // pred_fallthru
          _
      $region16: #{tpu_custom_call.1} parent=5 // pred_fallthru
        _
      %p124 = scmp.le.s32.totalorder 1, %s10
      %p125 = scmp.lt.s32.totalorder %s10, 3
      %p126 = pnand %p124, %p125
      %p127 = pneg %p126
      // Predicated region
      $region21: #{tpu_custom_call.1} parent=5 // pred_check
        _
      $region22: #{tpu_custom_call.1} parent=5 // pred_check_branch
        %129 = sbr.rel (%p126) target = $region24
      $region23: #{tpu_custom_call.1} parent=5 // pred_region
        %s130 = ssub.s32 %s10, 1
        %s131 = smul.u32 8, %s22
        %p132 = scmp.lt.s32.totalorder %s20, 1
        %s133 = scalar_select %p132, %s20, 1
        %p134 = scmp.lt.s32.totalorder %s131, 7
        %s135 = scalar_select %p134, %s131, 7
        %p136 = scmp.lt.s32.totalorder %s21, 0
        %s137 = scalar_select %p136, %s21, 0
        %s138 = sadd.s32 %s137, %s135
        %s139 = smul.addr %s133, 8
        %s140 = sadd.s32 %s138, %s139
        %s141 = smul.addr %s140, 8
        %s142 = scalar_lea.vmem %s0, %s141
        %p143 = pneg %p59
        %p144 = pneg %p56
        %p145 = pneg %p89
        %p146 = pneg %p86
        %s147 = sand.u32 %s76, 1
        %s148 = scalar_lea.sflag [#allocation3], %s147
        %s149 = sand.u32 %s76, 1
        %s150 = smul.addr %s149, 32
        %s151 = scalar_lea.vmem [#allocation2], %s150
        %s152 = smul.u32 8, %s22
        %p153 = scmp.lt.s32.totalorder %s20, 1
        %s154 = scalar_select %p153, %s20, 1
        %p155 = scmp.lt.s32.totalorder %s152, 7
        %s156 = scalar_select %p155, %s152, 7
        %p157 = scmp.lt.s32.totalorder %s21, 0
        %s158 = scalar_select %p157, %s21, 0
        %s159 = sadd.s32 %s158, %s156
        %s160 = smul.addr %s154, 8
        %s161 = sadd.s32 %s159, %s160
        %s162 = smul.addr %s161, 8
        %s163 = scalar_lea.vmem %s0, %s162
        %s164 = smul.u32 8, %s22
        %s165 = smul.u32 4, %s21
        %v166 = vld [vmem:[%s163] sm:$0xff]
        %v167 = vld [vmem:[%s163 + $0x8] sm:$0xff]
        %v168 = vld [vmem:[%s163 + $0x10] sm:$0xff]
        %v169 = vld [vmem:[%s163 + $0x18] sm:$0xff]
        %v170 = vld [vmem:[%s163 + $0x20] sm:$0xff]
        %v171 = vld [vmem:[%s163 + $0x28] sm:$0xff]
        %v172 = vld [vmem:[%s163 + $0x30] sm:$0xff]
        %v173 = vld [vmem:[%s163 + $0x38] sm:$0xff]
        %174 = vxpose.xlu0.b32.start [1/16] %v166, 128
        %175 = vxpose.xlu0.b32.cont [2/16] %v167, 128
        %176 = vxpose.xlu0.b32.cont [3/16] %v168, 128
        %177 = vxpose.xlu0.b32.cont [4/16] %v169, 128
        %178 = vxpose.xlu0.b32.cont [5/16] %v170, 128
        %179 = vxpose.xlu0.b32.cont [6/16] %v171, 128
        %180 = vxpose.xlu0.b32.cont [7/16] %v172, 128
        %181 = vxpose.xlu0.b32.cont [8/16] %v173, 128
        %182 = vxpose.xlu0.b32.cont [9/16] 0.0, 128
        %183 = vxpose.xlu0.b32.cont [10/16] 0.0, 128
        %184 = vxpose.xlu0.b32.cont [11/16] 0.0, 128
        %185 = vxpose.xlu0.b32.cont [12/16] 0.0, 128
        %186 = vxpose.xlu0.b32.cont [13/16] 0.0, 128
        %187 = vxpose.xlu0.b32.cont [14/16] 0.0, 128
        %188 = vxpose.xlu0.b32.cont [15/16] 0.0, 128
        %189 = vxpose.xlu0.b32.end [16/16] 0.0, 128
        %v190 = vpop.trf.xlu0
        %v191 = vpop.trf.xlu0
        %v192 = vpop.trf.xlu0
        %v193 = vpop.trf.xlu0
        %v194 = vpop.trf.xlu0
        %v195 = vpop.trf.xlu0
        %v196 = vpop.trf.xlu0
        %v197 = vpop.trf.xlu0
        %v198 = vpop.trf.xlu0
        %v199 = vpop.trf.xlu0
        %v200 = vpop.trf.xlu0
        %v201 = vpop.trf.xlu0
        %v202 = vpop.trf.xlu0
        %v203 = vpop.trf.xlu0
        %v204 = vpop.trf.xlu0
        %v205 = vpop.trf.xlu0
        %vm206 = vcmask 523264
        %207 = vst.msk [vmem:[%s151] sm:$0xff] %vm206, %v190
        %208 = vst.msk [vmem:[%s151 + $0x8] sm:$0xff] %vm206, %v191
        %209 = vst.msk [vmem:[%s151 + $0x10] sm:$0xff] %vm206, %v192
        %210 = vst.msk [vmem:[%s151 + $0x18] sm:$0xff] %vm206, %v193
        %s211 = sand.u32 %s76, 1
        %s212 = scalar_lea.sflag [#allocation3], %s211
        %s213 = sand.u32 %s76, 1
        %s214 = smul.addr %s213, 32
        %s215 = scalar_lea.vmem [#allocation2], %s214
        // Predicated region
        $region25: #{tpu_custom_call.1} parent=23 // pred_check
          %p216 = pneg %p86
        $region26: #{tpu_custom_call.1} parent=23 // pred_check_branch
          %218 = sbr.rel (%p216) target = $region28
        $region27: #{tpu_custom_call.1} parent=23 // pred_region
          %s219 = smul.u32 4, %s21
          %s221 = ssub.s32 512, 512
          %222 = vsyncadd %s212, %s221
          %s223 = sadd.s32 %s22, %s219
          %s224 = smul.addr %s20, 4
          %s225 = sadd.s32 %s223, %s224
          %s226 = smul.addr %s225, 128
          %s227 = scalar_lea.hbm %s1, %s226
          %s228 = sshll.u32 %s215, 4
          %s229 = int_to_ptr.vmem [resolvable:$true] %s228
          %234 = dma.vmem_to_hbm [thread:$0]  %s229, 512, %s227, %s212, 128, 128, 8
        $region28: #{tpu_custom_call.1} parent=23 // pred_fallthru
          _
      $region24: #{tpu_custom_call.1} parent=5 // pred_fallthru
        _
      %p235 = scmp.le.s32.totalorder 2, %s10
      // Predicated region
      $region29: #{tpu_custom_call.1} parent=5 // pred_check
        %p236 = pneg %p235
      $region30: #{tpu_custom_call.1} parent=5 // pred_check_branch
        %238 = sbr.rel (%p236) target = $region32
      $region31: #{tpu_custom_call.1} parent=5 // pred_region
        %s239 = ssub.s32 %s10, 2
        // Predicated region
        $region33: #{tpu_custom_call.1} parent=31 // pred_check
          %p240 = pneg %p92
        $region34: #{tpu_custom_call.1} parent=31 // pred_check_branch
          %242 = sbr.rel (%p240) target = $region36
        $region35: #{tpu_custom_call.1} parent=31 // pred_region
          %s243 = sand.u32 %s77, 1
          %s244 = scalar_lea.sflag [#allocation3], %s243
          %s245 = sand.u32 %s77, 1
          %s246 = smul.addr %s245, 32
          %s247 = scalar_lea.vmem [#allocation2], %s246
          %248 = dma.done %s244, 512
        $region36: #{tpu_custom_call.1} parent=31 // pred_fallthru
          _
      $region32: #{tpu_custom_call.1} parent=5 // pred_fallthru
        _
    $region6: #{tpu_custom_call.1} parent=1 // loop_footer
      %s14 = sadd.s32 1, %s10
    $region7: #{tpu_custom_call.1} parent=1 // loop_footer_branch
      %9 = sbr.rel target = $region3
    $region8: #{tpu_custom_call.1} parent=1 // loop_exit
      _
    %249 = vsyncpa [#allocation3], 1
    %s250 = scalar_lea.sflag [#allocation3], 1
    %251 = vsyncpa %s250, 1

</llo_original>
